<compile_context>
chip_gen: v6e
topology: v6e:2x2x1
jax: 0.10.0
libtpu: 0.0.40
codegen_flags: <defaults>
</compile_context>

<pallas_src>
import functools

import jax
import jax.numpy as jnp
from jax.experimental import pallas as pl
from jax.experimental.pallas import tpu as pltpu


# ---------------------------------------------------------------------------
# Kernel
# ---------------------------------------------------------------------------
def _make_kernel(approx_recip):
    def s2tsa_kernel(x_ref, w1_ref, b1_ref, w_ref, b_ref, o_ref):
        TB, S, H = x_ref.shape

        x = x_ref[...]                                       # (TB, S, H) f32
        # Flatten the batch block so the MXU M dimension is TB*S.  With S a
        # multiple of 8 (f32 sublane) this reshape is tile-aligned and free;
        # unaligned S is still correct, just relayouts.
        x_bf = x.reshape(TB * S, H).astype(jnp.bfloat16)

        # f = ReLU(x @ W1^T + b1); cast to bf16 immediately so no f32 copy of
        # f stays live (shorter live ranges -> bigger TB fits).
        f_bf = jnp.maximum(
            jnp.dot(x_bf, w1_ref[...], preferred_element_type=jnp.float32)
            + b1_ref[...], 0.0).astype(jnp.bfloat16)

        # logits = f @ W^T + b, back in (TB, S, H)
        logits = (jnp.dot(f_bf, w_ref[...], preferred_element_type=jnp.float32)
                  + b_ref[...]).reshape(TB, S, H)

        # softmax over the seq axis (dim=-2) fused with the weighted sum:
        #   out = sum_s e[s]*x[s] / sum_s e[s],   e = exp(logits - max)
        # `logits` is dead after `e`; no (TB,S,H) softmax-weights temporary.
        m = jnp.max(logits, axis=1, keepdims=True)           # (TB, 1, H)
        e = jnp.exp(logits - m)                              # (TB, S, H)
        num = jnp.sum(e * x, axis=1)                         # (TB, H)
        denom = jnp.sum(e, axis=1)                           # (TB, H)

        if approx_recip:
            out = num * pl.reciprocal(denom, approx=True)    # EUP slot, ~free
        else:
            out = num / denom
        o_ref[...] = out.astype(o_ref.dtype)

    return s2tsa_kernel


# ---------------------------------------------------------------------------
# Sizing / feature probes
# ---------------------------------------------------------------------------
_DEFAULT_VMEM_BYTES = 64 * 1024 * 1024  # smallest physical VMEM (v7x per-TC)


@functools.lru_cache(maxsize=None)
def _vmem_budget_bytes():
    """~75% of this generation's physical VMEM (128 MiB v5e/v6e, 64 MiB v7x)."""
    cap = None
    try:  # narrow, targeted hardware query; never wraps the real kernel.
        cap = getattr(pltpu.get_tpu_info(), "vmem_capacity_bytes", None)
    except Exception:
        cap = None
    if not cap:
        cap = _DEFAULT_VMEM_BYTES
    return int(cap) * 3 // 4


@functools.lru_cache(maxsize=None)
def _single_buffered_specs_supported():
    """One-time feature probe: does this jax/Mosaic accept
    pipeline_mode=pl.Buffered(1) on top-level pallas_call BlockSpecs?

    A tiny dedicated kernel is compiled and checked once (cached).  The real
    s2tSA kernel call is never wrapped in a try/except, so genuine
    VMEM/compile failures are not masked by this check."""
    def probe_kernel(w_ref, o_ref):
        o_ref[...] = w_ref[...] + 1.0

    try:
        fn = pl.pallas_call(
            probe_kernel,
            out_shape=jax.ShapeDtypeStruct((16, 128), jnp.float32),
            grid=(2,),
            in_specs=[pl.BlockSpec((8, 128), lambda i: (0, 0),
                                   pipeline_mode=pl.Buffered(1))],
            out_specs=pl.BlockSpec((8, 128), lambda i: (i, 0)),
        )
        out = jax.block_until_ready(fn(jnp.zeros((8, 128), jnp.float32)))
        return bool(jnp.allclose(out, 1.0))
    except Exception:  # targeted feature probe only
        return False


def _select_batch_block(B, S, H, vmem_budget):
    """Batch rows processed per grid step.

    Sized from the VMEM budget: per-step footprint is ~6x the f32 x block
    (double-buffered input + logits/exp temporaries + bf16 staging).  Targets
    an x block of >= ~2 MiB and a flattened MXU M dim (TB*S) >= 512 to reach
    the HBM roofline, keeps TB a multiple of 8 (sublane-dense output stores),
    and caps TB so >= 2 grid blocks remain whenever B >= 16 (v7x dual-TC
    sharding of the "parallel" axis)."""
    if B <= 8:
        return B

    x_row_bytes = S * H * 4
    per_row = 6 * x_row_bytes
    # resident weights/biases (worst case double-buffered bf16) + headroom
    fixed = 4 * H * H * 2 + 4 * H * 4 + (4 << 20)
    avail = max(vmem_budget - fixed, 8 * per_row)
    tb_mem = max(8, avail // per_row)

    tb_target = max(pl.cdiv(2 * 1024 * 1024, x_row_bytes), pl.cdiv(512, S), 8)
    tb = min(tb_mem, tb_target, B)

    if B >= 16:                                # keep at least two grid blocks
        tb = min(tb, max(8, (B // 2) // 8 * 8))
    tb = max(8, (tb // 8) * 8)                 # sublane-aligned

    # Prefer a nearby multiple of 8 that divides B (no ragged last block).
    cand = tb
    while cand >= 8 and cand * 2 >= tb:
        if B % cand == 0:
            return cand
        cand -= 8
    # Non-divisor fallback: grid = cdiv(B, TB); Pallas masks the OOB rows of
    # the ragged last block (valid rows are computed independently).
    return tb


# ---------------------------------------------------------------------------
# Wrapper
# ---------------------------------------------------------------------------
def s2tsa_forward(x, w1_t, b1, w_t, b, *, approx_recip=True):
    """source2token self-attention.

    x:          (B, S, H) or (B, block_num, S, H) float32
    w1_t, w_t:  (H, H) weights pre-transposed to (in, out) layout
    b1, b:      (1, H) biases
    returns     (B, [block_num], H) float32

    Precision notes (documented deviations from the f32 PyTorch module):
    matmul operands are bf16 with f32 MXU accumulation; with approx_recip the
    softmax normalizer uses the EUP approximate reciprocal.
    """
    orig_shape = x.shape
    if x.ndim == 4:
        x = x.reshape(orig_shape[0] * orig_shape[1], orig_shape[2], orig_shape[3])
    B, S, H = x.shape

    vmem_budget = _vmem_budget_bytes()
    TB = _select_batch_block(B, S, H, vmem_budget)
    n_blocks = pl.cdiv(B, TB)

    # bf16 weights for the MXU (native on v5e/v6e/v7x); f32 biases are added
    # after the f32 accumulate.
    w1_bf = w1_t.astype(jnp.bfloat16)
    w_bf = w_t.astype(jnp.bfloat16)
    b1_f = b1.reshape(1, H).astype(jnp.float32)
    b_f = b.reshape(1, H).astype(jnp.float32)

    # Weights/biases never change across grid steps; single-buffer them when
    # supported (halves resident weight VMEM -- matters for large H on v7x).
    if _single_buffered_specs_supported():
        def const_spec(shape):
            return pl.BlockSpec(shape, lambda i: (0, 0),
                                pipeline_mode=pl.Buffered(1))
    else:
        def const_spec(shape):
            return pl.BlockSpec(shape, lambda i: (0, 0))

    cost = pl.CostEstimate(
        flops=4 * B * S * H * H + 8 * B * S * H,   # two matmuls + elementwise
        transcendentals=B * S * H,                 # exp
        bytes_accessed=B * S * H * 4 + 2 * H * H * 2 + 2 * H * 4 + B * H * 4,
    )

    out = pl.pallas_call(
        _make_kernel(approx_recip),
        out_shape=jax.ShapeDtypeStruct((B, H), x.dtype),
        grid_spec=pltpu.PrefetchScalarGridSpec(
            num_scalar_prefetch=0,
            grid=(n_blocks,),
            in_specs=[
                pl.BlockSpec((TB, S, H), lambda i: (i, 0, 0)),  # x batch block
                const_spec((H, H)),                             # W1^T (bf16)
                const_spec((1, H)),                             # b1
                const_spec((H, H)),                             # W^T  (bf16)
                const_spec((1, H)),                             # b
            ],
            out_specs=pl.BlockSpec((TB, H), lambda i: (i, 0)),
        ),
        compiler_params=pltpu.CompilerParams(
            dimension_semantics=("parallel",),   # v7x: shard blocks over 2 TCs
            vmem_limit_bytes=vmem_budget,
        ),
        cost_estimate=cost,
    )(x, w1_bf, b1_f, w_bf, b_f)

    if len(orig_shape) == 4:
        out = out.reshape(orig_shape[0], orig_shape[1], H)
    return out


# ---------------------------------------------------------------------------
# References & self-test
# ---------------------------------------------------------------------------
def xavier_uniform(key, out_dim, in_dim, dtype=jnp.float32):
    bound = float(jnp.sqrt(6.0 / (in_dim + out_dim)))
    return jax.random.uniform(key, (out_dim, in_dim), dtype=dtype,
                              minval=-bound, maxval=bound)


def reference_forward_f32(x, w1_t, b1, w_t, b):
    f = jax.nn.relu(x @ w1_t + b1)
    a = jax.nn.softmax(f @ w_t + b, axis=-2)
    return jnp.sum(a * x, axis=-2)


def reference_forward_bf16(x, w1_t, b1, w_t, b):
    # mimics the kernel's bf16-operand / f32-accumulate matmuls
    f = jnp.maximum(
        jnp.dot(x.astype(jnp.bfloat16), w1_t.astype(jnp.bfloat16),
                preferred_element_type=jnp.float32) + b1, 0.0)
    logits = jnp.dot(f.astype(jnp.bfloat16), w_t.astype(jnp.bfloat16),
                     preferred_element_type=jnp.float32) + b
    a = jax.nn.softmax(logits, axis=-2)
    return jnp.sum(a * x, axis=-2)


if __name__ == "__main__":
    key = jax.random.PRNGKey(0)

    def run_case(shape, case_key):
        kx, k1, k2 = jax.random.split(case_key, 3)
        H = shape[-1]
        x = jax.random.normal(kx, shape, dtype=jnp.float32)
        # PyTorch nn.Linear weights are (out, in); pre-transpose so the kernel
        # computes x @ W^T directly.  Biases are zero (nn.init.constant(bias, 0)).
        W1 = xavier_uniform(k1, H, H)
        W = xavier_uniform(k2, H, H)
        b1 = jnp.zeros((1, H), jnp.float32)
        b = jnp.zeros((1, H), jnp.float32)
        w1_t, w_t = W1.T, W.T

        out = jax.block_until_ready(s2tsa_forward(x, w1_t, b1, w_t, b))
        assert out.shape == shape[:-2] + (H,), (out.shape, shape)

        ref_bf = reference_forward_bf16(x, w1_t, b1, w_t, b)
        ref_f32 = reference_forward_f32(x, w1_t, b1, w_t, b)
        assert jnp.allclose(out, ref_bf, atol=1e-2, rtol=1e-2), \
            f"mismatch vs bf16-matmul reference for shape {shape}"
        assert jnp.allclose(out, ref_f32, atol=5e-2, rtol=5e-2), \
            f"mismatch vs f32 reference for shape {shape}"

    keys = jax.random.split(key, 4)
    # TPU-friendly: TB=8, grid=2 (parallel axis splittable), lane-dense H=128.
    run_case((16, 16, 128), keys[0])
    # Tiny unaligned shape: single full-batch block (blocks = full array dims).
    run_case((2, 8, 32), keys[1])
    # B not a multiple of TB: TB=8, grid=cdiv(12,8)=2, ragged last block.
    run_case((12, 8, 32), keys[2])
    # 4D (batch, block_num, seq, hidden) as documented in the module docstring.
    run_case((2, 8, 16, 128), keys[3])

    print("KERNEL_OK")
</pallas_src>

<mosaic_0001>
module attributes {stable_mosaic.version = 11 : i64} {
  func.func @probe_kernel(%arg0: i32, %arg1: memref<8x128xf32, #tpu.memory_space<vmem>>, %arg2: memref<8x128xf32, #tpu.memory_space<vmem>>) attributes {dimension_semantics = [#tpu.dimension_semantics<arbitrary>], iteration_bounds = array<i64: 2>, scalar_prefetch = 0 : i64, scratch_operands = 0 : i64, tpu.core_type = #tpu.core_type<tc>, window_params = [{pipeline_mode = #tpu.pipeline_mode<synchronous>, transform_indices = @transform_0, window_bounds = array<i64: 8, 128>}, {transform_indices = @transform_1, window_bounds = array<i64: 8, 128>}]} {
    %c0 = arith.constant 0 : index
    %c0_0 = arith.constant 0 : index
    %0 = vector.load %arg1[%c0, %c0_0] : memref<8x128xf32, #tpu.memory_space<vmem>>, vector<8x128xf32>
    %cst = arith.constant 1.000000e+00 : f32
    %1 = vector.broadcast %cst : f32 to vector<8x128xf32>
    %2 = arith.addf %0, %1 : vector<8x128xf32>
    %c0_1 = arith.constant 0 : index
    %c0_2 = arith.constant 0 : index
    %3 = vector.load %arg2[%c0_1, %c0_2] : memref<8x128xf32, #tpu.memory_space<vmem>>, vector<8x128xf32>
    tpu.vector_store %arg2[%c0_1, %c0_2], %2 {strides = array<i32>} : memref<8x128xf32, #tpu.memory_space<vmem>>, vector<8x128xf32>,
    return
  }
  func.func @transform_0(%arg0: i32) -> (i32, i32) {
    %c0_i32 = arith.constant 0 : i32
    %c0_i32_0 = arith.constant 0 : i32
    %c0_i32_1 = arith.constant 0 : i32
    return %c0_i32, %c0_i32_0 : i32, i32
  }
  func.func @transform_1(%arg0: i32) -> (i32, i32) {
    %c0_i32 = arith.constant 0 : i32
    %c0_i32_0 = arith.constant 0 : i32
    return %arg0, %c0_i32 : i32, i32
  }
}

module attributes {stable_mosaic.version = 11 : i64} {
  func.func @s2tsa_kernel(%arg0: i32, %arg1: memref<8x16x128xf32, #tpu.memory_space<vmem>>, %arg2: memref<128x128xbf16, #tpu.memory_space<vmem>>, %arg3: memref<1x128xf32, #tpu.memory_space<vmem>>, %arg4: memref<128x128xbf16, #tpu.memory_space<vmem>>, %arg5: memref<1x128xf32, #tpu.memory_space<vmem>>, %arg6: memref<8x128xf32, #tpu.memory_space<vmem>>) attributes {dimension_semantics = [#tpu.dimension_semantics<parallel>], iteration_bounds = array<i64: 2>, scalar_prefetch = 0 : i64, scratch_operands = 0 : i64, tpu.core_type = #tpu.core_type<tc>, window_params = [{transform_indices = @transform_0, window_bounds = array<i64: 8, 16, 128>}, {pipeline_mode = #tpu.pipeline_mode<synchronous>, transform_indices = @transform_1, window_bounds = array<i64: 128, 128>}, {pipeline_mode = #tpu.pipeline_mode<synchronous>, transform_indices = @transform_2, window_bounds = array<i64: 1, 128>}, {pipeline_mode = #tpu.pipeline_mode<synchronous>, transform_indices = @transform_3, window_bounds = array<i64: 128, 128>}, {pipeline_mode = #tpu.pipeline_mode<synchronous>, transform_indices = @transform_4, window_bounds = array<i64: 1, 128>}, {transform_indices = @transform_5, window_bounds = array<i64: 8, 128>}]} {
    %c0 = arith.constant 0 : index
    %c0_0 = arith.constant 0 : index
    %c0_1 = arith.constant 0 : index
    %0 = vector.load %arg1[%c0, %c0_0, %c0_1] : memref<8x16x128xf32, #tpu.memory_space<vmem>>, vector<8x16x128xf32>
    %1 = vector.shape_cast %0 : vector<8x16x128xf32> to vector<128x128xf32>
    %2 = arith.truncf %1 : vector<128x128xf32> to vector<128x128xbf16>
    %c0_2 = arith.constant 0 : index
    %c0_3 = arith.constant 0 : index
    %3 = vector.load %arg2[%c0_2, %c0_3] : memref<128x128xbf16, #tpu.memory_space<vmem>>, vector<128x128xbf16>
    %cst = arith.constant dense<0.000000e+00> : vector<128x128xf32>
    %4 = tpu.matmul %2, %3, %cst {dimension_numbers = #tpu.dot_dimension_numbers<[1], [0], [0], [1], [0, 0, 1, 1], [], []>} : vector<128x128xbf16>, vector<128x128xbf16>, vector<128x128xf32> -> vector<128x128xf32>
    %c0_4 = arith.constant 0 : index
    %c0_5 = arith.constant 0 : index
    %5 = vector.load %arg3[%c0_4, %c0_5] : memref<1x128xf32, #tpu.memory_space<vmem>>, vector<1x128xf32>
    %6 = vector.broadcast %5 : vector<1x128xf32> to vector<128x128xf32>
    %7 = arith.addf %4, %6 : vector<128x128xf32>
    %cst_6 = arith.constant 0.000000e+00 : f32
    %8 = vector.broadcast %cst_6 : f32 to vector<128x128xf32>
    %9 = arith.maximumf %7, %8 : vector<128x128xf32>
    %10 = arith.truncf %9 : vector<128x128xf32> to vector<128x128xbf16>
    %c0_7 = arith.constant 0 : index
    %c0_8 = arith.constant 0 : index
    %11 = vector.load %arg4[%c0_7, %c0_8] : memref<128x128xbf16, #tpu.memory_space<vmem>>, vector<128x128xbf16>
    %cst_9 = arith.constant dense<0.000000e+00> : vector<128x128xf32>
    %12 = tpu.matmul %10, %11, %cst_9 {dimension_numbers = #tpu.dot_dimension_numbers<[1], [0], [0], [1], [0, 0, 1, 1], [], []>} : vector<128x128xbf16>, vector<128x128xbf16>, vector<128x128xf32> -> vector<128x128xf32>
    %c0_10 = arith.constant 0 : index
    %c0_11 = arith.constant 0 : index
    %13 = vector.load %arg5[%c0_10, %c0_11] : memref<1x128xf32, #tpu.memory_space<vmem>>, vector<1x128xf32>
    %14 = vector.broadcast %13 : vector<1x128xf32> to vector<128x128xf32>
    %15 = arith.addf %12, %14 : vector<128x128xf32>
    %16 = vector.shape_cast %15 : vector<128x128xf32> to vector<8x16x128xf32>
    %cst_12 = arith.constant dense<0xFF800000> : vector<8x128xf32>
    %17 = vector.multi_reduction <maximumf>, %16, %cst_12 [1] : vector<8x16x128xf32> to vector<8x128xf32>
    %18 = vector.shape_cast %17 : vector<8x128xf32> to vector<8x1x128xf32>
    %19 = vector.broadcast %18 : vector<8x1x128xf32> to vector<8x16x128xf32>
    %20 = arith.subf %16, %19 : vector<8x16x128xf32>
    %21 = math.exp %20 : vector<8x16x128xf32>
    %22 = arith.mulf %21, %0 : vector<8x16x128xf32>
    %cst_13 = arith.constant dense<0.000000e+00> : vector<8x128xf32>
    %23 = vector.multi_reduction <add>, %22, %cst_13 [1] : vector<8x16x128xf32> to vector<8x128xf32>
    %cst_14 = arith.constant dense<0.000000e+00> : vector<8x128xf32>
    %24 = vector.multi_reduction <add>, %21, %cst_14 [1] : vector<8x16x128xf32> to vector<8x128xf32>
    %25 = tpu.reciprocal %24 {approx = true} : vector<8x128xf32> -> vector<8x128xf32>
    %26 = arith.mulf %23, %25 : vector<8x128xf32>
    %c0_15 = arith.constant 0 : index
    %c0_16 = arith.constant 0 : index
    %27 = vector.load %arg6[%c0_15, %c0_16] : memref<8x128xf32, #tpu.memory_space<vmem>>, vector<8x128xf32>
    tpu.vector_store %arg6[%c0_15, %c0_16], %26 {strides = array<i32>} : memref<8x128xf32, #tpu.memory_space<vmem>>, vector<8x128xf32>,
    return
  }
  func.func @transform_0(%arg0: i32) -> (i32, i32, i32) {
    %c0_i32 = arith.constant 0 : i32
    %c0_i32_0 = arith.constant 0 : i32
    %c0_i32_1 = arith.constant 0 : i32
    return %arg0, %c0_i32, %c0_i32_0 : i32, i32, i32
  }
  func.func @transform_1(%arg0: i32) -> (i32, i32) {
    %c0_i32 = arith.constant 0 : i32
    %c0_i32_0 = arith.constant 0 : i32
    %c0_i32_1 = arith.constant 0 : i32
    return %c0_i32, %c0_i32_0 : i32, i32
  }
  func.func @transform_2(%arg0: i32) -> (i32, i32) {
    %c0_i32 = arith.constant 0 : i32
    %c0_i32_0 = arith.constant 0 : i32
    %c0_i32_1 = arith.constant 0 : i32
    return %c0_i32, %c0_i32_0 : i32, i32
  }
  func.func @transform_3(%arg0: i32) -> (i32, i32) {
    %c0_i32 = arith.constant 0 : i32
    %c0_i32_0 = arith.constant 0 : i32
    %c0_i32_1 = arith.constant 0 : i32
    return %c0_i32, %c0_i32_0 : i32, i32
  }
  func.func @transform_4(%arg0: i32) -> (i32, i32) {
    %c0_i32 = arith.constant 0 : i32
    %c0_i32_0 = arith.constant 0 : i32
    %c0_i32_1 = arith.constant 0 : i32
    return %c0_i32, %c0_i32_0 : i32, i32
  }
  func.func @transform_5(%arg0: i32) -> (i32, i32) {
    %c0_i32 = arith.constant 0 : i32
    %c0_i32_0 = arith.constant 0 : i32
    return %arg0, %c0_i32 : i32, i32
  }
}

</mosaic_0001>

<llo_original>
// kernel: tpu_custom_call.1
$region0: #{tpu_custom_call.1}
  #allocation0 [shape = 'u32[]', space=smem, size = 0x4, offset = 0x4, fixed_abs, tag = 'smem constant byte address 0x4 - core index']
  #allocation1 [shape = 'u32[144,128]{1,0:T(1,128)}', space=vmem, size = 0x12000, scoped, tag = 'internal scratch']
  %s0 = inlined_call_operand.hbm [shape: f32[8,128], index: 0, kind: input, shape index: {}]
  %s1 = inlined_call_operand.hbm [shape: f32[16,128], index: 1, kind: output, shape index: {}]
  %s2 = sld [smem:[#allocation0]]
  $region41: #{tpu_custom_call.1} parent=0
    _
  %s4 = ssub.s32 1, %s2
  %s5 = scalar_select 0, %s4, %s2
  $region1: #{tpu_custom_call.1} parent=0
    #allocation2 [shape = 'u8[4096]{0}', space=vmem, size = 0x1000, scoped, tag = 'input window, operand 0, single buffered']
    #allocation3 [shape = 's32[2]{0}', space=sflag, size = 0x8, scoped, tag = 'scoped memory for tpu_custom_call.1']
    #allocation4 [shape = 's32[2]{0}', space=sflag, size = 0x8, scoped, tag = 'scoped memory for tpu_custom_call.1']
    #allocation5 [shape = 'u8[8192]{0}', space=vmem, size = 0x2000, scoped, tag = 'output window, operand 0']
    %6 = vsyncpa [#allocation3], 0
    %7 = vsyncpa [#allocation4], 0
    %s8 = scalar_lea.sflag [#allocation4], 1
    %9 = vsyncpa %s8, 0
    loop: start=0, step=1, limit=4
    $region2: #{tpu_custom_call.1} parent=1 // loop_pre_header
      _
    $region3: #{tpu_custom_call.1} parent=1 // loop_header
      %s11 = sphi 0, %s15
      %p12 = scmp.ge.s32.totalorder %s11, 4
      %s19 = sphi 0, %s19
      %s21 = sphi 0, %s19
      %s22 = sphi 0, %s21
      %s36 = sphi 0, %s22
      %s42 = sphi 0, %s44
      %s45 = sphi 0, %s42
      %s46 = sphi 0, %s45
      %s62 = sphi 0, %s46
    $region4: #{tpu_custom_call.1} parent=1 // loop_header_branch
      %14 = sbr.rel (%p12) target = $region8
    $region5: #{tpu_custom_call.1} parent=1 // loop_body
      %s16 = ssub.s32 %s11, 1
      %s17 = ssub.s32 %s11, 2
      %s18 = sadd.s32 %s11, 1
      %s20 = sadd.s32 %s19, 1
      %p23 = scmp.eq.s32.totalorder %s11, 1
      %p24 = scmp.ne.s32.totalorder %s19, %s21
      %p25 = scmp.eq.s32.totalorder %s11, 0
      %p26 = por %p24, %p25
      %p27 = scmp.ne.s32.totalorder %s19, %s21
      %p28 = scmp.eq.s32.totalorder %s16, 1
      %p29 = por %p27, %p28
      %p30 = scmp.ne.s32.totalorder %s21, %s22
      %p31 = scmp.eq.s32.totalorder %s16, 0
      %p32 = por %p30, %p31
      %p33 = scmp.ne.s32.totalorder %s21, %s22
      %p34 = scmp.eq.s32.totalorder %s17, 1
      %p35 = por %p33, %p34
      %p37 = scmp.ne.s32.totalorder %s22, %s36
      %p38 = scmp.eq.s32.totalorder %s17, 0
      %p39 = por %p37, %p38
      %s40 = ssub.s32 %s11, %s18
      %p41 = scmp.eq.s32.totalorder %s40, 0
      %s43 = sadd.s32 %s42, 1
      %s44 = scalar_select %p41, %s42, %s43
      %p47 = pneg %p41
      %p48 = scmp.eq.s32.totalorder %s11, 1
      %p49 = por %p47, %p48
      %p50 = scmp.ne.s32.totalorder %s42, %s45
      %p51 = scmp.eq.s32.totalorder %s11, 0
      %p52 = por %p50, %p51
      %p53 = scmp.ne.s32.totalorder %s42, %s45
      %p54 = scmp.eq.s32.totalorder %s16, 1
      %p55 = por %p53, %p54
      %p56 = scmp.ne.s32.totalorder %s45, %s46
      %p57 = scmp.eq.s32.totalorder %s16, 0
      %p58 = por %p56, %p57
      %p59 = scmp.ne.s32.totalorder %s45, %s46
      %p60 = scmp.eq.s32.totalorder %s17, 1
      %p61 = por %p59, %p60
      %p63 = scmp.ne.s32.totalorder %s46, %s62
      %p64 = scmp.eq.s32.totalorder %s17, 0
      %p65 = por %p63, %p64
      %p66 = scmp.le.s32.totalorder 1, %s11
      %p67 = scmp.lt.s32.totalorder %s11, 3
      %p68 = pnand %p66, %p67
      %p69 = pneg %p68
      // Predicated region
      $region9: #{tpu_custom_call.1} parent=5 // pred_check
        _
      $region10: #{tpu_custom_call.1} parent=5 // pred_check_branch
        %71 = sbr.rel (%p68) target = $region12
      $region11: #{tpu_custom_call.1} parent=5 // pred_region
        %s72 = ssub.s32 %s11, 1
        // Predicated region
        $region13: #{tpu_custom_call.1} parent=11 // pred_check
          %p73 = pneg %p32
        $region14: #{tpu_custom_call.1} parent=11 // pred_check_branch
          %75 = sbr.rel (%p73) target = $region16
        $region15: #{tpu_custom_call.1} parent=11 // pred_region
          %s77 = ssub.s32 128, 128
          %78 = vsyncadd [#allocation3], %s77
          %s80 = sshll.u32 [#allocation2], 4
          %s81 = int_to_ptr.vmem [resolvable:$true] %s80
          %83 = dma.hbm_to_vmem [thread:$0]  %s0, 128, %s81, [#allocation3]
        $region16: #{tpu_custom_call.1} parent=11 // pred_fallthru
          _
      $region12: #{tpu_custom_call.1} parent=5 // pred_fallthru
        _
      %p84 = scmp.lt.s32.totalorder %s11, 2
      // Predicated region
      $region17: #{tpu_custom_call.1} parent=5 // pred_check
        %p85 = pneg %p84
      $region18: #{tpu_custom_call.1} parent=5 // pred_check_branch
        %87 = sbr.rel (%p85) target = $region20
      $region19: #{tpu_custom_call.1} parent=5 // pred_region
        _
      $region20: #{tpu_custom_call.1} parent=5 // pred_fallthru
        _
      %p88 = scmp.le.s32.totalorder 1, %s11
      %p89 = scmp.lt.s32.totalorder %s11, 3
      %p90 = pnand %p88, %p89
      %p91 = pneg %p90
      // Predicated region
      $region21: #{tpu_custom_call.1} parent=5 // pred_check
        _
      $region22: #{tpu_custom_call.1} parent=5 // pred_check_branch
        %93 = sbr.rel (%p90) target = $region24
      $region23: #{tpu_custom_call.1} parent=5 // pred_region
        %s94 = ssub.s32 %s11, 1
        // Predicated region
        $region25: #{tpu_custom_call.1} parent=23 // pred_check
          %p95 = pneg %p32
        $region26: #{tpu_custom_call.1} parent=23 // pred_check_branch
          %97 = sbr.rel (%p95) target = $region28
        $region27: #{tpu_custom_call.1} parent=23 // pred_region
          %98 = dma.done [#allocation3], 128
        $region28: #{tpu_custom_call.1} parent=23 // pred_fallthru
          _
        %p99 = pneg %p32
        %p100 = pneg %p29
        %p101 = pneg %p58
        %p102 = pneg %p55
        %s103 = sand.u32 %s45, 1
        %s104 = scalar_lea.sflag [#allocation4], %s103
        %s105 = sand.u32 %s45, 1
        %s106 = smul.addr %s105, 8
        %s107 = scalar_lea.vmem [#allocation5], %s106
        %v108 = vld [vmem:[#allocation2] sm:$0xff]
        %v109 = vadd.f32 %v108, 1.0
        %110 = vst [vmem:[%s107] sm:$0xff] %v109
        %s111 = sand.u32 %s45, 1
        %s112 = scalar_lea.sflag [#allocation4], %s111
        %s113 = sand.u32 %s45, 1
        %s114 = smul.addr %s113, 8
        %s115 = scalar_lea.vmem [#allocation5], %s114
        // Predicated region
        $region29: #{tpu_custom_call.1} parent=23 // pred_check
          %p116 = pneg %p55
        $region30: #{tpu_custom_call.1} parent=23 // pred_check_branch
          %118 = sbr.rel (%p116) target = $region32
        $region31: #{tpu_custom_call.1} parent=23 // pred_region
          %s120 = ssub.s32 128, 128
          %121 = vsyncadd %s112, %s120
          %s122 = smul.addr %s16, 128
          %s123 = scalar_lea.hbm %s1, %s122
          %s125 = sshll.u32 %s115, 4
          %s126 = int_to_ptr.vmem [resolvable:$true] %s125
          %128 = dma.vmem_to_hbm [thread:$0]  %s126, 128, %s123, %s112
        $region32: #{tpu_custom_call.1} parent=23 // pred_fallthru
          _
      $region24: #{tpu_custom_call.1} parent=5 // pred_fallthru
        _
      %p129 = scmp.le.s32.totalorder 2, %s11
      // Predicated region
      $region33: #{tpu_custom_call.1} parent=5 // pred_check
        %p130 = pneg %p129
      $region34: #{tpu_custom_call.1} parent=5 // pred_check_branch
        %132 = sbr.rel (%p130) target = $region36
      $region35: #{tpu_custom_call.1} parent=5 // pred_region
        %s133 = ssub.s32 %s11, 2
        // Predicated region
        $region37: #{tpu_custom_call.1} parent=35 // pred_check
          %p134 = pneg %p61
        $region38: #{tpu_custom_call.1} parent=35 // pred_check_branch
          %136 = sbr.rel (%p134) target = $region40
        $region39: #{tpu_custom_call.1} parent=35 // pred_region
          %s137 = sand.u32 %s46, 1
          %s138 = scalar_lea.sflag [#allocation4], %s137
          %s139 = sand.u32 %s46, 1
          %s140 = smul.addr %s139, 8
          %s141 = scalar_lea.vmem [#allocation5], %s140
          %142 = dma.done %s138, 128
        $region40: #{tpu_custom_call.1} parent=35 // pred_fallthru
          _
      $region36: #{tpu_custom_call.1} parent=5 // pred_fallthru
        _
    $region6: #{tpu_custom_call.1} parent=1 // loop_footer
      %s15 = sadd.s32 1, %s11
    $region7: #{tpu_custom_call.1} parent=1 // loop_footer_branch
      %10 = sbr.rel target = $region3
    $region8: #{tpu_custom_call.1} parent=1 // loop_exit
      _
    %143 = vsyncpa [#allocation3], 1
    %s144 = scalar_lea.sflag [#allocation3], 1
    %145 = vsyncpa %s144, 1
    %146 = vsyncpa [#allocation4], 1
    %s147 = scalar_lea.sflag [#allocation4], 1
    %148 = vsyncpa %s147, 1

// kernel: tpu_custom_call.1
$region0: #{tpu_custom_call.1}
  #allocation0 [shape = 'u32[]', space=smem, size = 0x4, offset = 0x4, fixed_abs, tag = 'smem constant byte address 0x4 - core index']
  #allocation1 [shape = 'u32[144,128]{1,0:T(1,128)}', space=vmem, size = 0x12000, scoped, tag = 'internal scratch']
  %s0 = inlined_call_operand.hbm [shape: f32[16,16,128], index: 0, kind: input, shape index: {}]
  %s1 = inlined_call_operand.hbm [shape: bf16[128,128], index: 1, kind: input, shape index: {}]
  %s2 = inlined_call_operand.vmem [shape: f32[1,128], index: 2, kind: input, shape index: {}]
  %s3 = inlined_call_operand.hbm [shape: bf16[128,128], index: 3, kind: input, shape index: {}]
  %s4 = inlined_call_operand.vmem [shape: f32[1,128], index: 4, kind: input, shape index: {}]
  %s5 = inlined_call_operand.hbm [shape: f32[16,128], index: 5, kind: output, shape index: {}]
  %s6 = sld [smem:[#allocation0]]
  $region65: #{tpu_custom_call.1} parent=0
    _
  %s8 = ssub.s32 1, %s6
  %s9 = scalar_select 0, %s8, %s6
  $region1: #{tpu_custom_call.1} parent=0
    #allocation2 [shape = 'u8[131072]{0}', space=vmem, size = 0x20000, scoped, tag = 'input window, operand 0']
    #allocation3 [shape = 's32[2]{0}', space=sflag, size = 0x8, scoped, tag = 'scoped memory for tpu_custom_call.1']
    #allocation4 [shape = 's32[2]{0}', space=sflag, size = 0x8, scoped, tag = 'scoped memory for tpu_custom_call.1']
    #allocation5 [shape = 'u8[32768]{0}', space=vmem, size = 0x8000, scoped, tag = 'input window, operand 1, single buffered']
    #allocation6 [shape = 's32[1]{0}', space=sflag, size = 0x4, scoped, tag = 'scoped memory for tpu_custom_call.1']
    #allocation7 [shape = 'u8[32768]{0}', space=vmem, size = 0x8000, scoped, tag = 'input window, operand 3, single buffered']
    #allocation8 [shape = 'u8[8192]{0}', space=vmem, size = 0x2000, scoped, tag = 'output window, operand 0']
    %10 = vsyncpa [#allocation3], 0
    %s11 = scalar_lea.sflag [#allocation3], 1
    %12 = vsyncpa %s11, 0
    %13 = vsyncpa [#allocation6], 0
    %14 = vsyncpa [#allocation4], 0
    %s15 = scalar_lea.sflag [#allocation4], 1
    %16 = vsyncpa %s15, 0
    loop: start=0, step=1, limit=4
    $region2: #{tpu_custom_call.1} parent=1 // loop_pre_header
      _
    $region3: #{tpu_custom_call.1} parent=1 // loop_header
      %s18 = sphi 0, %s22
      %p19 = scmp.ge.s32.totalorder %s18, 4
      %s28 = sphi 0, %s30
      %s31 = sphi 0, %s28
      %s32 = sphi 0, %s31
      %s48 = sphi 0, %s32
      %s52 = sphi 0, %s52
      %s54 = sphi 0, %s52
      %s55 = sphi 0, %s54
      %s69 = sphi 0, %s55
      %s73 = sphi 0, %s73
      %s75 = sphi 0, %s73
      %s76 = sphi 0, %s75
      %s90 = sphi 0, %s76
      %s94 = sphi 0, %s94
      %s96 = sphi 0, %s94
      %s97 = sphi 0, %s96
      %s111 = sphi 0, %s97
      %s115 = sphi 0, %s115
      %s117 = sphi 0, %s115
      %s118 = sphi 0, %s117
      %s132 = sphi 0, %s118
      %s138 = sphi 0, %s140
      %s141 = sphi 0, %s138
      %s142 = sphi 0, %s141
      %s158 = sphi 0, %s142
    $region4: #{tpu_custom_call.1} parent=1 // loop_header_branch
      %21 = sbr.rel (%p19) target = $region8
    $region5: #{tpu_custom_call.1} parent=1 // loop_body
      %s23 = ssub.s32 %s18, 1
      %s24 = ssub.s32 %s18, 2
      %s25 = sadd.s32 %s18, 1
      %s26 = ssub.s32 %s18, %s25
      %p27 = scmp.eq.s32.totalorder %s26, 0
      %s29 = sadd.s32 %s28, 1
      %s30 = scalar_select %p27, %s28, %s29
      %p33 = pneg %p27
      %p34 = scmp.eq.s32.totalorder %s18, 1
      %p35 = por %p33, %p34
      %p36 = scmp.ne.s32.totalorder %s28, %s31
      %p37 = scmp.eq.s32.totalorder %s18, 0
      %p38 = por %p36, %p37
      %p39 = scmp.ne.s32.totalorder %s28, %s31
      %p40 = scmp.eq.s32.totalorder %s23, 1
      %p41 = por %p39, %p40
      %p42 = scmp.ne.s32.totalorder %s31, %s32
      %p43 = scmp.eq.s32.totalorder %s23, 0
      %p44 = por %p42, %p43
      %p45 = scmp.ne.s32.totalorder %s31, %s32
      %p46 = scmp.eq.s32.totalorder %s24, 1
      %p47 = por %p45, %p46
      %p49 = scmp.ne.s32.totalorder %s32, %s48
      %p50 = scmp.eq.s32.totalorder %s24, 0
      %p51 = por %p49, %p50
      %s53 = sadd.s32 %s52, 1
      %p56 = scmp.eq.s32.totalorder %s18, 1
      %p57 = scmp.ne.s32.totalorder %s52, %s54
      %p58 = scmp.eq.s32.totalorder %s18, 0
      %p59 = por %p57, %p58
      %p60 = scmp.ne.s32.totalorder %s52, %s54
      %p61 = scmp.eq.s32.totalorder %s23, 1
      %p62 = por %p60, %p61
      %p63 = scmp.ne.s32.totalorder %s54, %s55
      %p64 = scmp.eq.s32.totalorder %s23, 0
      %p65 = por %p63, %p64
      %p66 = scmp.ne.s32.totalorder %s54, %s55
      %p67 = scmp.eq.s32.totalorder %s24, 1
      %p68 = por %p66, %p67
      %p70 = scmp.ne.s32.totalorder %s55, %s69
      %p71 = scmp.eq.s32.totalorder %s24, 0
      %p72 = por %p70, %p71
      %s74 = sadd.s32 %s73, 1
      %p77 = scmp.eq.s32.totalorder %s18, 1
      %p78 = scmp.ne.s32.totalorder %s73, %s75
      %p79 = scmp.eq.s32.totalorder %s18, 0
      %p80 = por %p78, %p79
      %p81 = scmp.ne.s32.totalorder %s73, %s75
      %p82 = scmp.eq.s32.totalorder %s23, 1
      %p83 = por %p81, %p82
      %p84 = scmp.ne.s32.totalorder %s75, %s76
      %p85 = scmp.eq.s32.totalorder %s23, 0
      %p86 = por %p84, %p85
      %p87 = scmp.ne.s32.totalorder %s75, %s76
      %p88 = scmp.eq.s32.totalorder %s24, 1
      %p89 = por %p87, %p88
      %p91 = scmp.ne.s32.totalorder %s76, %s90
      %p92 = scmp.eq.s32.totalorder %s24, 0
      %p93 = por %p91, %p92
      %s95 = sadd.s32 %s94, 1
      %p98 = scmp.eq.s32.totalorder %s18, 1
      %p99 = scmp.ne.s32.totalorder %s94, %s96
      %p100 = scmp.eq.s32.totalorder %s18, 0
      %p101 = por %p99, %p100
      %p102 = scmp.ne.s32.totalorder %s94, %s96
      %p103 = scmp.eq.s32.totalorder %s23, 1
      %p104 = por %p102, %p103
      %p105 = scmp.ne.s32.totalorder %s96, %s97
      %p106 = scmp.eq.s32.totalorder %s23, 0
      %p107 = por %p105, %p106
      %p108 = scmp.ne.s32.totalorder %s96, %s97
      %p109 = scmp.eq.s32.totalorder %s24, 1
      %p110 = por %p108, %p109
      %p112 = scmp.ne.s32.totalorder %s97, %s111
      %p113 = scmp.eq.s32.totalorder %s24, 0
      %p114 = por %p112, %p113
      %s116 = sadd.s32 %s115, 1
      %p119 = scmp.eq.s32.totalorder %s18, 1
      %p120 = scmp.ne.s32.totalorder %s115, %s117
      %p121 = scmp.eq.s32.totalorder %s18, 0
      %p122 = por %p120, %p121
      %p123 = scmp.ne.s32.totalorder %s115, %s117
      %p124 = scmp.eq.s32.totalorder %s23, 1
      %p125 = por %p123, %p124
      %p126 = scmp.ne.s32.totalorder %s117, %s118
      %p127 = scmp.eq.s32.totalorder %s23, 0
      %p128 = por %p126, %p127
      %p129 = scmp.ne.s32.totalorder %s117, %s118
      %p130 = scmp.eq.s32.totalorder %s24, 1
      %p131 = por %p129, %p130
      %p133 = scmp.ne.s32.totalorder %s118, %s132
      %p134 = scmp.eq.s32.totalorder %s24, 0
      %p135 = por %p133, %p134
      %s136 = ssub.s32 %s18, %s25
      %p137 = scmp.eq.s32.totalorder %s136, 0
      %s139 = sadd.s32 %s138, 1
      %s140 = scalar_select %p137, %s138, %s139
      %p143 = pneg %p137
      %p144 = scmp.eq.s32.totalorder %s18, 1
      %p145 = por %p143, %p144
      %p146 = scmp.ne.s32.totalorder %s138, %s141
      %p147 = scmp.eq.s32.totalorder %s18, 0
      %p148 = por %p146, %p147
      %p149 = scmp.ne.s32.totalorder %s138, %s141
      %p150 = scmp.eq.s32.totalorder %s23, 1
      %p151 = por %p149, %p150
      %p152 = scmp.ne.s32.totalorder %s141, %s142
      %p153 = scmp.eq.s32.totalorder %s23, 0
      %p154 = por %p152, %p153
      %p155 = scmp.ne.s32.totalorder %s141, %s142
      %p156 = scmp.eq.s32.totalorder %s24, 1
      %p157 = por %p155, %p156
      %p159 = scmp.ne.s32.totalorder %s142, %s158
      %p160 = scmp.eq.s32.totalorder %s24, 0
      %p161 = por %p159, %p160
      %p162 = scmp.le.s32.totalorder 1, %s18
      %p163 = scmp.lt.s32.totalorder %s18, 3
      %p164 = pnand %p162, %p163
      %p165 = pneg %p164
      // Predicated region
      $region9: #{tpu_custom_call.1} parent=5 // pred_check
        _
      $region10: #{tpu_custom_call.1} parent=5 // pred_check_branch
        %167 = sbr.rel (%p164) target = $region12
      $region11: #{tpu_custom_call.1} parent=5 // pred_region
        %s168 = ssub.s32 %s18, 1
        // Predicated region
        $region13: #{tpu_custom_call.1} parent=11 // pred_check
          %p169 = pneg %p65
        $region14: #{tpu_custom_call.1} parent=11 // pred_check_branch
          %171 = sbr.rel (%p169) target = $region16
        $region15: #{tpu_custom_call.1} parent=11 // pred_region
          %s173 = ssub.s32 1024, 1024
          %174 = vsyncadd [#allocation6], %s173
          %s175 = sshll.u32 [#allocation5], 4
          %s176 = int_to_ptr.vmem [resolvable:$true] %s175
          %181 = dma.hbm_to_vmem [thread:$0]  %s1, 1024, %s176, [#allocation6], 64, 64, 4
        $region16: #{tpu_custom_call.1} parent=11 // pred_fallthru
          _
        // Predicated region
        $region17: #{tpu_custom_call.1} parent=11 // pred_check
          %p182 = pneg %p86
        $region18: #{tpu_custom_call.1} parent=11 // pred_check_branch
          %184 = sbr.rel (%p182) target = $region20
        $region19: #{tpu_custom_call.1} parent=11 // pred_region
          _
        $region20: #{tpu_custom_call.1} parent=11 // pred_fallthru
          _
        // Predicated region
        $region21: #{tpu_custom_call.1} parent=11 // pred_check
          %p185 = pneg %p107
        $region22: #{tpu_custom_call.1} parent=11 // pred_check_branch
          %187 = sbr.rel (%p185) target = $region24
        $region23: #{tpu_custom_call.1} parent=11 // pred_region
          %s189 = ssub.s32 1024, 1024
          %190 = vsyncadd [#allocation6], %s189
          %s191 = sshll.u32 [#allocation7], 4
          %s192 = int_to_ptr.vmem [resolvable:$true] %s191
          %197 = dma.hbm_to_vmem [thread:$0]  %s3, 1024, %s192, [#allocation6], 64, 64, 4
        $region24: #{tpu_custom_call.1} parent=11 // pred_fallthru
          _
        // Predicated region
        $region25: #{tpu_custom_call.1} parent=11 // pred_check
          %p198 = pneg %p128
        $region26: #{tpu_custom_call.1} parent=11 // pred_check_branch
          %200 = sbr.rel (%p198) target = $region28
        $region27: #{tpu_custom_call.1} parent=11 // pred_region
          _
        $region28: #{tpu_custom_call.1} parent=11 // pred_fallthru
          _
      $region12: #{tpu_custom_call.1} parent=5 // pred_fallthru
        _
      %p201 = scmp.lt.s32.totalorder %s18, 2
      // Predicated region
      $region29: #{tpu_custom_call.1} parent=5 // pred_check
        %p202 = pneg %p201
      $region30: #{tpu_custom_call.1} parent=5 // pred_check_branch
        %204 = sbr.rel (%p202) target = $region32
      $region31: #{tpu_custom_call.1} parent=5 // pred_region
        // Predicated region
        $region33: #{tpu_custom_call.1} parent=31 // pred_check
          %p205 = pneg %p38
        $region34: #{tpu_custom_call.1} parent=31 // pred_check_branch
          %207 = sbr.rel (%p205) target = $region36
        $region35: #{tpu_custom_call.1} parent=31 // pred_region
          %s208 = sand.u32 %s28, 1
          %s209 = scalar_lea.sflag [#allocation3], %s208
          %s210 = sand.u32 %s28, 1
          %s211 = smul.addr %s210, 128
          %s212 = scalar_lea.vmem [#allocation2], %s211
          %s213 = smul.u32 8, %s18
          %s215 = ssub.s32 2048, 2048
          %216 = vsyncadd %s209, %s215
          %s217 = smul.addr %s213, 2
          %s218 = smul.addr %s217, 128
          %s219 = scalar_lea.hbm %s0, %s218
          %s220 = sshll.u32 %s212, 4
          %s221 = int_to_ptr.vmem [resolvable:$true] %s220
          %226 = dma.hbm_to_vmem [thread:$0]  %s219, 2048, %s221, %s209, 128, 128, 8
        $region36: #{tpu_custom_call.1} parent=31 // pred_fallthru
          _
      $region32: #{tpu_custom_call.1} parent=5 // pred_fallthru
        _
      %p227 = scmp.le.s32.totalorder 1, %s18
      %p228 = scmp.lt.s32.totalorder %s18, 3
      %p229 = pnand %p227, %p228
      %p230 = pneg %p229
      // Predicated region
      $region37: #{tpu_custom_call.1} parent=5 // pred_check
        _
      $region38: #{tpu_custom_call.1} parent=5 // pred_check_branch
        %232 = sbr.rel (%p229) target = $region40
      $region39: #{tpu_custom_call.1} parent=5 // pred_region
        %s233 = ssub.s32 %s18, 1
        %s234 = sand.u32 %s31, 1
        %s235 = scalar_lea.sflag [#allocation3], %s234
        %s236 = sand.u32 %s31, 1
        %s237 = smul.addr %s236, 128
        %s238 = scalar_lea.vmem [#allocation2], %s237
        // Predicated region
        $region41: #{tpu_custom_call.1} parent=39 // pred_check
          %p239 = pneg %p44
        $region42: #{tpu_custom_call.1} parent=39 // pred_check_branch
          %241 = sbr.rel (%p239) target = $region44
        $region43: #{tpu_custom_call.1} parent=39 // pred_region
          %242 = dma.done %s235, 2048
        $region44: #{tpu_custom_call.1} parent=39 // pred_fallthru
          _
        // Predicated region
        $region45: #{tpu_custom_call.1} parent=39 // pred_check
          %p243 = pneg %p65
        $region46: #{tpu_custom_call.1} parent=39 // pred_check_branch
          %245 = sbr.rel (%p243) target = $region48
        $region47: #{tpu_custom_call.1} parent=39 // pred_region
          %246 = dma.done [#allocation6], 1024
        $region48: #{tpu_custom_call.1} parent=39 // pred_fallthru
          _
        // Predicated region
        $region49: #{tpu_custom_call.1} parent=39 // pred_check
          %p247 = pneg %p107
        $region50: #{tpu_custom_call.1} parent=39 // pred_check_branch
          %249 = sbr.rel (%p247) target = $region52
        $region51: #{tpu_custom_call.1} parent=39 // pred_region
          %250 = dma.done [#allocation6], 1024
        $region52: #{tpu_custom_call.1} parent=39 // pred_fallthru
          _
        %s251 = sand.u32 %s31, 1
        %s252 = scalar_lea.sflag [#allocation3], %s251
        %s253 = sand.u32 %s31, 1
        %s254 = smul.addr %s253, 128
        %s255 = scalar_lea.vmem [#allocation2], %s254
        %p256 = pneg %p44
        %p257 = pneg %p41
        %p258 = pneg %p65
        %p259 = pneg %p62
        %p260 = pneg %p86
        %p261 = pneg %p83
        %p262 = pneg %p107
        %p263 = pneg %p104
        %p264 = pneg %p128
        %p265 = pneg %p125
        %p266 = pneg %p154
        %p267 = pneg %p151
        %s268 = sand.u32 %s141, 1
        %s269 = scalar_lea.sflag [#allocation4], %s268
        %s270 = sand.u32 %s141, 1
        %s271 = smul.addr %s270, 8
        %s272 = scalar_lea.vmem [#allocation8], %s271
        %s273 = smul.u32 8, %s23
        %v275 = vld [vmem:[%s238] sm:$0xff]
        %v276 = vld [vmem:[%s238 + $0x8] sm:$0xff]
        %v277 = vld [vmem:[%s238 + $0x10] sm:$0xff]
        %v278 = vld [vmem:[%s238 + $0x18] sm:$0xff]
        %v279 = vld [vmem:[%s238 + $0x20] sm:$0xff]
        %v280 = vld [vmem:[%s238 + $0x28] sm:$0xff]
        %v281 = vld [vmem:[%s238 + $0x30] sm:$0xff]
        %v282 = vld [vmem:[%s238 + $0x38] sm:$0xff]
        %v283 = vld [vmem:[%s238 + $0x40] sm:$0xff]
        %v284 = vld [vmem:[%s238 + $0x48] sm:$0xff]
        %v285 = vld [vmem:[%s238 + $0x50] sm:$0xff]
        %v286 = vld [vmem:[%s238 + $0x58] sm:$0xff]
        %v287 = vld [vmem:[%s238 + $0x60] sm:$0xff]
        %v288 = vld [vmem:[%s238 + $0x68] sm:$0xff]
        %v289 = vld [vmem:[%s238 + $0x70] sm:$0xff]
        %v290 = vld [vmem:[%s238 + $0x78] sm:$0xff]
        %v291 = vpack.c.bf16 %v276, %v275
        %v292 = vpack.c.bf16 %v278, %v277
        %v293 = vpack.c.bf16 %v280, %v279
        %v294 = vpack.c.bf16 %v282, %v281
        %v295 = vpack.c.bf16 %v284, %v283
        %v296 = vpack.c.bf16 %v286, %v285
        %v297 = vpack.c.bf16 %v288, %v287
        %v298 = vpack.c.bf16 %v290, %v289
        %v299 = vld [vmem:[#allocation5] sm:$0xf]
        %v300 = vld [vmem:[#allocation5 + $0x4] sm:$0xf]
        %v301 = vld [vmem:[#allocation5 + $0x8] sm:$0xf]
        %v302 = vld [vmem:[#allocation5 + $0xc] sm:$0xf]
        %v303 = vld [vmem:[#allocation5 + $0x10] sm:$0xf]
        %v304 = vld [vmem:[#allocation5 + $0x14] sm:$0xf]
        %v305 = vld [vmem:[#allocation5 + $0x18] sm:$0xf]
        %v306 = vld [vmem:[#allocation5 + $0x1c] sm:$0xf]
        %v307 = vld [vmem:[#allocation5 + $0x20] sm:$0xf]
        %v308 = vld [vmem:[#allocation5 + $0x24] sm:$0xf]
        %v309 = vld [vmem:[#allocation5 + $0x28] sm:$0xf]
        %v310 = vld [vmem:[#allocation5 + $0x2c] sm:$0xf]
        %v311 = vld [vmem:[#allocation5 + $0x30] sm:$0xf]
        %v312 = vld [vmem:[#allocation5 + $0x34] sm:$0xf]
        %v313 = vld [vmem:[#allocation5 + $0x38] sm:$0xf]
        %v314 = vld [vmem:[#allocation5 + $0x3c] sm:$0xf]
        %v315 = vld [vmem:[%s2] sm:$0x1]
        %v317 = vlaneseq
        %v318 = vshrl.u32 %v317, 7
        %v319 = vsub.s32 0, %v318
        %v320 = vrot.slane %v315, %v319
        %v338 = vunpack.c.l.b16 %v299
        %v339 = vunpack.c.l.b16 %v300
        %v340 = vunpack.c.l.b16 %v301
        %v341 = vunpack.c.l.b16 %v302
        %v342 = vunpack.c.l.b16 %v303
        %v343 = vunpack.c.l.b16 %v304
        %v344 = vunpack.c.l.b16 %v305
        %v345 = vunpack.c.l.b16 %v306
        %v346 = vunpack.c.l.b16 %v307
        %v347 = vunpack.c.l.b16 %v308
        %v348 = vunpack.c.l.b16 %v309
        %v349 = vunpack.c.l.b16 %v310
        %v350 = vunpack.c.l.b16 %v311
        %v351 = vunpack.c.l.b16 %v312
        %v352 = vunpack.c.l.b16 %v313
        %v353 = vunpack.c.l.b16 %v314
        %v354 = vpack.c.b16 %v339, %v338
        %v355 = vpack.c.b16 %v341, %v340
        %v356 = vpack.c.b16 %v343, %v342
        %v357 = vpack.c.b16 %v345, %v344
        %v358 = vpack.c.b16 %v347, %v346
        %v359 = vpack.c.b16 %v349, %v348
        %v360 = vpack.c.b16 %v351, %v350
        %v361 = vpack.c.b16 %v353, %v352
        %370 = vmatprep.subr.bf16.mxu0 0
        %371 = vmatpush1.bf16.msra.mxu0 %v361
        %372 = vmatprep.subr.bf16.mxu0 0
        %373 = vmatpush1.bf16.msra.mxu0 %v360
        %374 = vmatprep.subr.bf16.mxu0 0
        %375 = vmatpush1.bf16.msra.mxu0 %v359
        %376 = vmatprep.subr.bf16.mxu0 0
        %377 = vmatpush1.bf16.msra.mxu0 %v358
        %378 = vmatprep.subr.bf16.mxu0 0
        %379 = vmatpush1.bf16.msra.mxu0 %v357
        %380 = vmatprep.subr.bf16.mxu0 0
        %381 = vmatpush1.bf16.msra.mxu0 %v356
        %382 = vmatprep.subr.bf16.mxu0 0
        %383 = vmatpush1.bf16.msra.mxu0 %v355
        %384 = vmatprep.subr.bf16.mxu0 0
        %385 = vmatpush1.bf16.msra.mxu0 %v354
        %386 = vmatprep.subr.bf16.mxu0 0
        %387 = vmatpush2.bf16.msra.mxu0 0
        %388 = vmatprep.subr.bf16.mxu0 0
        %389 = vmatpush2.bf16.msra.mxu0 0
        %390 = vmatprep.subr.bf16.mxu0 0
        %391 = vmatpush2.bf16.msra.mxu0 0
        %392 = vmatprep.subr.bf16.mxu0 0
        %393 = vmatpush2.bf16.msra.mxu0 0
        %394 = vmatprep.subr.bf16.mxu0 0
        %395 = vmatpush2.bf16.msra.mxu0 0
        %396 = vmatprep.subr.bf16.mxu0 0
        %397 = vmatpush2.bf16.msra.mxu0 0
        %398 = vmatprep.subr.bf16.mxu0 0
        %399 = vmatpush2.bf16.msra.mxu0 0
        %400 = vmatprep.subr.bf16.mxu0 0
        %401 = vmatpush2.bf16.msra.mxu0 0
        %402 = vmatprep.mubr.bf16.mxu0 0
        %403 = vmatmul.mubr.bf16.gmra.mxu0 %v291
        %v404 = vpop.f32.mrf.mxu0
        %v405 = vadd.f32 %v320, %v404
        %v406 = vpop.f32.mrf.mxu0
        %v407 = vpop.f32.mrf.mxu0
        %v408 = vadd.f32 %v320, %v407
        %v409 = vpop.f32.mrf.mxu0
        %410 = vmatprep.mubr.bf16.mxu0 0
        %411 = vmatmul.mubr.bf16.gmra.mxu0 %v292
        %v412 = vpop.f32.mrf.mxu0
        %v413 = vadd.f32 %v320, %v412
        %v414 = vpop.f32.mrf.mxu0
        %v415 = vpop.f32.mrf.mxu0
        %v416 = vadd.f32 %v320, %v415
        %v417 = vpop.f32.mrf.mxu0
        %418 = vmatprep.mubr.bf16.mxu0 0
        %419 = vmatmul.mubr.bf16.gmra.mxu0 %v293
        %v420 = vpop.f32.mrf.mxu0
        %v421 = vadd.f32 %v320, %v420
        %v422 = vpop.f32.mrf.mxu0
        %v423 = vpop.f32.mrf.mxu0
        %v424 = vadd.f32 %v320, %v423
        %v425 = vpop.f32.mrf.mxu0
        %426 = vmatprep.mubr.bf16.mxu0 0
        %427 = vmatmul.mubr.bf16.gmra.mxu0 %v294
        %v428 = vpop.f32.mrf.mxu0
        %v429 = vadd.f32 %v320, %v428
        %v430 = vpop.f32.mrf.mxu0
        %v431 = vpop.f32.mrf.mxu0
        %v432 = vadd.f32 %v320, %v431
        %v433 = vpop.f32.mrf.mxu0
        %434 = vmatprep.mubr.bf16.mxu0 0
        %435 = vmatmul.mubr.bf16.gmra.mxu0 %v295
        %v436 = vpop.f32.mrf.mxu0
        %v437 = vadd.f32 %v320, %v436
        %v438 = vpop.f32.mrf.mxu0
        %v439 = vpop.f32.mrf.mxu0
        %v440 = vadd.f32 %v320, %v439
        %v441 = vpop.f32.mrf.mxu0
        %442 = vmatprep.mubr.bf16.mxu0 0
        %443 = vmatmul.mubr.bf16.gmra.mxu0 %v296
        %v444 = vpop.f32.mrf.mxu0
        %v445 = vadd.f32 %v320, %v444
        %v446 = vpop.f32.mrf.mxu0
        %v447 = vpop.f32.mrf.mxu0
        %v448 = vadd.f32 %v320, %v447
        %v449 = vpop.f32.mrf.mxu0
        %450 = vmatprep.mubr.bf16.mxu0 0
        %451 = vmatmul.mubr.bf16.gmra.mxu0 %v297
        %v452 = vpop.f32.mrf.mxu0
        %v453 = vadd.f32 %v320, %v452
        %v454 = vpop.f32.mrf.mxu0
        %v455 = vpop.f32.mrf.mxu0
        %v456 = vadd.f32 %v320, %v455
        %v457 = vpop.f32.mrf.mxu0
        %458 = vmatprep.mubr.bf16.mxu0 0
        %459 = vmatmul.mubr.bf16.gmra.mxu0 %v298
        %v460 = vpop.f32.mrf.mxu0
        %v461 = vadd.f32 %v320, %v460
        %v462 = vpop.f32.mrf.mxu0
        %v463 = vpop.f32.mrf.mxu0
        %v464 = vadd.f32 %v320, %v463
        %v465 = vpop.f32.mrf.mxu0
        %466 = vdwg.mxu0
        %v467 = vmax.f32 %v405, 0.0
        %v468 = vmax.f32 %v408, 0.0
        %v469 = vmax.f32 %v413, 0.0
        %v470 = vmax.f32 %v416, 0.0
        %v471 = vmax.f32 %v421, 0.0
        %v472 = vmax.f32 %v424, 0.0
        %v473 = vmax.f32 %v429, 0.0
        %v474 = vmax.f32 %v432, 0.0
        %v475 = vmax.f32 %v437, 0.0
        %v476 = vmax.f32 %v440, 0.0
        %v477 = vmax.f32 %v445, 0.0
        %v478 = vmax.f32 %v448, 0.0
        %v479 = vmax.f32 %v453, 0.0
        %v480 = vmax.f32 %v456, 0.0
        %v481 = vmax.f32 %v461, 0.0
        %v482 = vmax.f32 %v464, 0.0
        %v483 = vpack.c.bf16 %v468, %v467
        %v484 = vpack.c.bf16 %v470, %v469
        %v485 = vpack.c.bf16 %v472, %v471
        %v486 = vpack.c.bf16 %v474, %v473
        %v487 = vpack.c.bf16 %v476, %v475
        %v488 = vpack.c.bf16 %v478, %v477
        %v489 = vpack.c.bf16 %v480, %v479
        %v490 = vpack.c.bf16 %v482, %v481
        %v491 = vld [vmem:[#allocation7] sm:$0xf]
        %v492 = vld [vmem:[#allocation7 + $0x4] sm:$0xf]
        %v493 = vld [vmem:[#allocation7 + $0x8] sm:$0xf]
        %v494 = vld [vmem:[#allocation7 + $0xc] sm:$0xf]
        %v495 = vld [vmem:[#allocation7 + $0x10] sm:$0xf]
        %v496 = vld [vmem:[#allocation7 + $0x14] sm:$0xf]
        %v497 = vld [vmem:[#allocation7 + $0x18] sm:$0xf]
        %v498 = vld [vmem:[#allocation7 + $0x1c] sm:$0xf]
        %v499 = vld [vmem:[#allocation7 + $0x20] sm:$0xf]
        %v500 = vld [vmem:[#allocation7 + $0x24] sm:$0xf]
        %v501 = vld [vmem:[#allocation7 + $0x28] sm:$0xf]
        %v502 = vld [vmem:[#allocation7 + $0x2c] sm:$0xf]
        %v503 = vld [vmem:[#allocation7 + $0x30] sm:$0xf]
        %v504 = vld [vmem:[#allocation7 + $0x34] sm:$0xf]
        %v505 = vld [vmem:[#allocation7 + $0x38] sm:$0xf]
        %v506 = vld [vmem:[#allocation7 + $0x3c] sm:$0xf]
        %v507 = vld [vmem:[%s4] sm:$0x1]
        %v509 = vlaneseq
        %v510 = vshrl.u32 %v509, 7
        %v511 = vsub.s32 0, %v510
        %v512 = vrot.slane %v507, %v511
        %v530 = vunpack.c.l.b16 %v491
        %v531 = vunpack.c.l.b16 %v492
        %v532 = vunpack.c.l.b16 %v493
        %v533 = vunpack.c.l.b16 %v494
        %v534 = vunpack.c.l.b16 %v495
        %v535 = vunpack.c.l.b16 %v496
        %v536 = vunpack.c.l.b16 %v497
        %v537 = vunpack.c.l.b16 %v498
        %v538 = vunpack.c.l.b16 %v499
        %v539 = vunpack.c.l.b16 %v500
        %v540 = vunpack.c.l.b16 %v501
        %v541 = vunpack.c.l.b16 %v502
        %v542 = vunpack.c.l.b16 %v503
        %v543 = vunpack.c.l.b16 %v504
        %v544 = vunpack.c.l.b16 %v505
        %v545 = vunpack.c.l.b16 %v506
        %v546 = vpack.c.b16 %v531, %v530
        %v547 = vpack.c.b16 %v533, %v532
        %v548 = vpack.c.b16 %v535, %v534
        %v549 = vpack.c.b16 %v537, %v536
        %v550 = vpack.c.b16 %v539, %v538
        %v551 = vpack.c.b16 %v541, %v540
        %v552 = vpack.c.b16 %v543, %v542
        %v553 = vpack.c.b16 %v545, %v544
        %562 = vmatprep.subr.bf16.mxu0 0
        %563 = vmatpush1.bf16.msra.mxu0 %v553
        %564 = vmatprep.subr.bf16.mxu0 0
        %565 = vmatpush1.bf16.msra.mxu0 %v552
        %566 = vmatprep.subr.bf16.mxu0 0
        %567 = vmatpush1.bf16.msra.mxu0 %v551
        %568 = vmatprep.subr.bf16.mxu0 0
        %569 = vmatpush1.bf16.msra.mxu0 %v550
        %570 = vmatprep.subr.bf16.mxu0 0
        %571 = vmatpush1.bf16.msra.mxu0 %v549
        %572 = vmatprep.subr.bf16.mxu0 0
        %573 = vmatpush1.bf16.msra.mxu0 %v548
        %574 = vmatprep.subr.bf16.mxu0 0
        %575 = vmatpush1.bf16.msra.mxu0 %v547
        %576 = vmatprep.subr.bf16.mxu0 0
        %577 = vmatpush1.bf16.msra.mxu0 %v546
        %578 = vmatprep.subr.bf16.mxu0 0
        %579 = vmatpush2.bf16.msra.mxu0 0
        %580 = vmatprep.subr.bf16.mxu0 0
        %581 = vmatpush2.bf16.msra.mxu0 0
        %582 = vmatprep.subr.bf16.mxu0 0
        %583 = vmatpush2.bf16.msra.mxu0 0
        %584 = vmatprep.subr.bf16.mxu0 0
        %585 = vmatpush2.bf16.msra.mxu0 0
        %586 = vmatprep.subr.bf16.mxu0 0
        %587 = vmatpush2.bf16.msra.mxu0 0
        %588 = vmatprep.subr.bf16.mxu0 0
        %589 = vmatpush2.bf16.msra.mxu0 0
        %590 = vmatprep.subr.bf16.mxu0 0
        %591 = vmatpush2.bf16.msra.mxu0 0
        %592 = vmatprep.subr.bf16.mxu0 0
        %593 = vmatpush2.bf16.msra.mxu0 0
        %594 = vmatprep.mubr.bf16.mxu0 0
        %595 = vmatmul.mubr.bf16.gmra.mxu0 %v483
        %v596 = vpop.f32.mrf.mxu0
        %v597 = vadd.f32 %v512, %v596
        %v598 = vpop.f32.mrf.mxu0
        %v599 = vpop.f32.mrf.mxu0
        %v600 = vadd.f32 %v512, %v599
        %v601 = vpop.f32.mrf.mxu0
        %602 = vmatprep.mubr.bf16.mxu0 0
        %603 = vmatmul.mubr.bf16.gmra.mxu0 %v484
        %v604 = vpop.f32.mrf.mxu0
        %v605 = vadd.f32 %v512, %v604
        %v606 = vpop.f32.mrf.mxu0
        %v607 = vpop.f32.mrf.mxu0
        %v608 = vadd.f32 %v512, %v607
        %v609 = vpop.f32.mrf.mxu0
        %610 = vmatprep.mubr.bf16.mxu0 0
        %611 = vmatmul.mubr.bf16.gmra.mxu0 %v485
        %v612 = vpop.f32.mrf.mxu0
        %v613 = vadd.f32 %v512, %v612
        %v614 = vpop.f32.mrf.mxu0
        %v615 = vpop.f32.mrf.mxu0
        %v616 = vadd.f32 %v512, %v615
        %v617 = vpop.f32.mrf.mxu0
        %618 = vmatprep.mubr.bf16.mxu0 0
        %619 = vmatmul.mubr.bf16.gmra.mxu0 %v486
        %v620 = vpop.f32.mrf.mxu0
        %v621 = vadd.f32 %v512, %v620
        %v622 = vpop.f32.mrf.mxu0
        %v623 = vpop.f32.mrf.mxu0
        %v624 = vadd.f32 %v512, %v623
        %v625 = vpop.f32.mrf.mxu0
        %626 = vmatprep.mubr.bf16.mxu0 0
        %627 = vmatmul.mubr.bf16.gmra.mxu0 %v487
        %v628 = vpop.f32.mrf.mxu0
        %v629 = vadd.f32 %v512, %v628
        %v630 = vpop.f32.mrf.mxu0
        %v631 = vpop.f32.mrf.mxu0
        %v632 = vadd.f32 %v512, %v631
        %v633 = vpop.f32.mrf.mxu0
        %634 = vmatprep.mubr.bf16.mxu0 0
        %635 = vmatmul.mubr.bf16.gmra.mxu0 %v488
        %v636 = vpop.f32.mrf.mxu0
        %v637 = vadd.f32 %v512, %v636
        %v638 = vpop.f32.mrf.mxu0
        %v639 = vpop.f32.mrf.mxu0
        %v640 = vadd.f32 %v512, %v639
        %v641 = vpop.f32.mrf.mxu0
        %642 = vmatprep.mubr.bf16.mxu0 0
        %643 = vmatmul.mubr.bf16.gmra.mxu0 %v489
        %v644 = vpop.f32.mrf.mxu0
        %v645 = vadd.f32 %v512, %v644
        %v646 = vpop.f32.mrf.mxu0
        %v647 = vpop.f32.mrf.mxu0
        %v648 = vadd.f32 %v512, %v647
        %v649 = vpop.f32.mrf.mxu0
        %650 = vmatprep.mubr.bf16.mxu0 0
        %651 = vmatmul.mubr.bf16.gmra.mxu0 %v490
        %v652 = vpop.f32.mrf.mxu0
        %v653 = vadd.f32 %v512, %v652
        %v654 = vpop.f32.mrf.mxu0
        %v655 = vpop.f32.mrf.mxu0
        %v656 = vadd.f32 %v512, %v655
        %v657 = vpop.f32.mrf.mxu0
        %658 = vdwg.mxu0
        %v659 = vmax.f32 %v597, %v600
        %v660 = vrot.slane %v659, 4
        %v661 = vmax.f32 %v659, %v660
        %v662 = vrot.slane %v661, 2
        %v663 = vmax.f32 %v661, %v662
        %v664 = vrot.slane %v663, 1
        %v665 = vmax.f32 %v663, %v664
        %v666 = vmax.f32 %v605, %v608
        %v667 = vrot.slane %v666, 4
        %v668 = vmax.f32 %v666, %v667
        %v669 = vrot.slane %v668, 2
        %v670 = vmax.f32 %v668, %v669
        %v671 = vrot.slane %v670, 1
        %v672 = vmax.f32 %v670, %v671
        %v673 = vmax.f32 %v613, %v616
        %v674 = vrot.slane %v673, 4
        %v675 = vmax.f32 %v673, %v674
        %v676 = vrot.slane %v675, 2
        %v677 = vmax.f32 %v675, %v676
        %v678 = vrot.slane %v677, 1
        %v679 = vmax.f32 %v677, %v678
        %v680 = vmax.f32 %v621, %v624
        %v681 = vrot.slane %v680, 4
        %v682 = vmax.f32 %v680, %v681
        %v683 = vrot.slane %v682, 2
        %v684 = vmax.f32 %v682, %v683
        %v685 = vrot.slane %v684, 1
        %v686 = vmax.f32 %v684, %v685
        %v687 = vmax.f32 %v629, %v632
        %v688 = vrot.slane %v687, 4
        %v689 = vmax.f32 %v687, %v688
        %v690 = vrot.slane %v689, 2
        %v691 = vmax.f32 %v689, %v690
        %v692 = vrot.slane %v691, 1
        %v693 = vmax.f32 %v691, %v692
        %v694 = vmax.f32 %v637, %v640
        %v695 = vrot.slane %v694, 4
        %v696 = vmax.f32 %v694, %v695
        %v697 = vrot.slane %v696, 2
        %v698 = vmax.f32 %v696, %v697
        %v699 = vrot.slane %v698, 1
        %v700 = vmax.f32 %v698, %v699
        %v701 = vmax.f32 %v645, %v648
        %v702 = vrot.slane %v701, 4
        %v703 = vmax.f32 %v701, %v702
        %v704 = vrot.slane %v703, 2
        %v705 = vmax.f32 %v703, %v704
        %v706 = vrot.slane %v705, 1
        %v707 = vmax.f32 %v705, %v706
        %v708 = vmax.f32 %v653, %v656
        %v709 = vrot.slane %v708, 4
        %v710 = vmax.f32 %v708, %v709
        %v711 = vrot.slane %v710, 2
        %v712 = vmax.f32 %v710, %v711
        %v713 = vrot.slane %v712, 1
        %v714 = vmax.f32 %v712, %v713
        %v715 = vsub.f32 %v597, %v665
        %v716 = vsub.f32 %v600, %v665
        %v717 = vsub.f32 %v605, %v672
        %v718 = vsub.f32 %v608, %v672
        %v719 = vsub.f32 %v613, %v679
        %v720 = vsub.f32 %v616, %v679
        %v721 = vsub.f32 %v621, %v686
        %v722 = vsub.f32 %v624, %v686
        %v723 = vsub.f32 %v629, %v693
        %v724 = vsub.f32 %v632, %v693
        %v725 = vsub.f32 %v637, %v700
        %v726 = vsub.f32 %v640, %v700
        %v727 = vsub.f32 %v645, %v707
        %v728 = vsub.f32 %v648, %v707
        %v729 = vsub.f32 %v653, %v714
        %v730 = vsub.f32 %v656, %v714
        %v731 = vmul.f32 %v715, 1.442695
        %v732 = vpow.pop %v731
        %v733 = vmul.f32 %v716, 1.442695
        %v734 = vpow.pop %v733
        %v735 = vmul.f32 %v717, 1.442695
        %v736 = vpow.pop %v735
        %v737 = vmul.f32 %v718, 1.442695
        %v738 = vpow.pop %v737
        %v739 = vmul.f32 %v719, 1.442695
        %v740 = vpow.pop %v739
        %v741 = vmul.f32 %v720, 1.442695
        %v742 = vpow.pop %v741
        %v743 = vmul.f32 %v721, 1.442695
        %v744 = vpow.pop %v743
        %v745 = vmul.f32 %v722, 1.442695
        %v746 = vpow.pop %v745
        %v747 = vmul.f32 %v723, 1.442695
        %v748 = vpow.pop %v747
        %v749 = vmul.f32 %v724, 1.442695
        %v750 = vpow.pop %v749
        %v751 = vmul.f32 %v725, 1.442695
        %v752 = vpow.pop %v751
        %v753 = vmul.f32 %v726, 1.442695
        %v754 = vpow.pop %v753
        %v755 = vmul.f32 %v727, 1.442695
        %v756 = vpow.pop %v755
        %v757 = vmul.f32 %v728, 1.442695
        %v758 = vpow.pop %v757
        %v759 = vmul.f32 %v729, 1.442695
        %v760 = vpow.pop %v759
        %v761 = vmul.f32 %v730, 1.442695
        %v762 = vpow.pop %v761
        %v763 = vmul.f32 %v732, %v275
        %v764 = vmul.f32 %v734, %v276
        %v765 = vmul.f32 %v736, %v277
        %v766 = vmul.f32 %v738, %v278
        %v767 = vmul.f32 %v740, %v279
        %v768 = vmul.f32 %v742, %v280
        %v769 = vmul.f32 %v744, %v281
        %v770 = vmul.f32 %v746, %v282
        %v771 = vmul.f32 %v748, %v283
        %v772 = vmul.f32 %v750, %v284
        %v773 = vmul.f32 %v752, %v285
        %v774 = vmul.f32 %v754, %v286
        %v775 = vmul.f32 %v756, %v287
        %v776 = vmul.f32 %v758, %v288
        %v777 = vmul.f32 %v760, %v289
        %v778 = vmul.f32 %v762, %v290
        %v779 = vadd.f32 %v763, %v764
        %v780 = vrot.slane %v779, 4
        %v781 = vadd.f32 %v779, %v780
        %v782 = vrot.slane %v781, 2
        %v783 = vadd.f32 %v781, %v782
        %v784 = vrot.slane %v783, 1
        %v785 = vadd.f32 %v783, %v784
        %v786 = vadd.f32 %v765, %v766
        %v787 = vrot.slane %v786, 4
        %v788 = vadd.f32 %v786, %v787
        %v789 = vrot.slane %v788, 2
        %v790 = vadd.f32 %v788, %v789
        %v791 = vrot.slane %v790, 1
        %v792 = vadd.f32 %v790, %v791
        %v793 = vadd.f32 %v767, %v768
        %v794 = vrot.slane %v793, 4
        %v795 = vadd.f32 %v793, %v794
        %v796 = vrot.slane %v795, 2
        %v797 = vadd.f32 %v795, %v796
        %v798 = vrot.slane %v797, 1
        %v799 = vadd.f32 %v797, %v798
        %v800 = vadd.f32 %v769, %v770
        %v801 = vrot.slane %v800, 4
        %v802 = vadd.f32 %v800, %v801
        %v803 = vrot.slane %v802, 2
        %v804 = vadd.f32 %v802, %v803
        %v805 = vrot.slane %v804, 1
        %v806 = vadd.f32 %v804, %v805
        %v807 = vadd.f32 %v771, %v772
        %v808 = vrot.slane %v807, 4
        %v809 = vadd.f32 %v807, %v808
        %v810 = vrot.slane %v809, 2
        %v811 = vadd.f32 %v809, %v810
        %v812 = vrot.slane %v811, 1
        %v813 = vadd.f32 %v811, %v812
        %v814 = vadd.f32 %v773, %v774
        %v815 = vrot.slane %v814, 4
        %v816 = vadd.f32 %v814, %v815
        %v817 = vrot.slane %v816, 2
        %v818 = vadd.f32 %v816, %v817
        %v819 = vrot.slane %v818, 1
        %v820 = vadd.f32 %v818, %v819
        %v821 = vadd.f32 %v775, %v776
        %v822 = vrot.slane %v821, 4
        %v823 = vadd.f32 %v821, %v822
        %v824 = vrot.slane %v823, 2
        %v825 = vadd.f32 %v823, %v824
        %v826 = vrot.slane %v825, 1
        %v827 = vadd.f32 %v825, %v826
        %v828 = vadd.f32 %v777, %v778
        %v829 = vrot.slane %v828, 4
        %v830 = vadd.f32 %v828, %v829
        %v831 = vrot.slane %v830, 2
        %v832 = vadd.f32 %v830, %v831
        %v833 = vrot.slane %v832, 1
        %v834 = vadd.f32 %v832, %v833
        %v835 = vadd.f32 %v732, %v734
        %v836 = vrot.slane %v835, 4
        %v837 = vadd.f32 %v835, %v836
        %v838 = vrot.slane %v837, 2
        %v839 = vadd.f32 %v837, %v838
        %v840 = vrot.slane %v839, 1
        %v841 = vadd.f32 %v839, %v840
        %v842 = vadd.f32 %v736, %v738
        %v843 = vrot.slane %v842, 4
        %v844 = vadd.f32 %v842, %v843
        %v845 = vrot.slane %v844, 2
        %v846 = vadd.f32 %v844, %v845
        %v847 = vrot.slane %v846, 1
        %v848 = vadd.f32 %v846, %v847
        %v849 = vadd.f32 %v740, %v742
        %v850 = vrot.slane %v849, 4
        %v851 = vadd.f32 %v849, %v850
        %v852 = vrot.slane %v851, 2
        %v853 = vadd.f32 %v851, %v852
        %v854 = vrot.slane %v853, 1
        %v855 = vadd.f32 %v853, %v854
        %v856 = vadd.f32 %v744, %v746
        %v857 = vrot.slane %v856, 4
        %v858 = vadd.f32 %v856, %v857
        %v859 = vrot.slane %v858, 2
        %v860 = vadd.f32 %v858, %v859
        %v861 = vrot.slane %v860, 1
        %v862 = vadd.f32 %v860, %v861
        %v863 = vadd.f32 %v748, %v750
        %v864 = vrot.slane %v863, 4
        %v865 = vadd.f32 %v863, %v864
        %v866 = vrot.slane %v865, 2
        %v867 = vadd.f32 %v865, %v866
        %v868 = vrot.slane %v867, 1
        %v869 = vadd.f32 %v867, %v868
        %v870 = vadd.f32 %v752, %v754
        %v871 = vrot.slane %v870, 4
        %v872 = vadd.f32 %v870, %v871
        %v873 = vrot.slane %v872, 2
        %v874 = vadd.f32 %v872, %v873
        %v875 = vrot.slane %v874, 1
        %v876 = vadd.f32 %v874, %v875
        %v877 = vadd.f32 %v756, %v758
        %v878 = vrot.slane %v877, 4
        %v879 = vadd.f32 %v877, %v878
        %v880 = vrot.slane %v879, 2
        %v881 = vadd.f32 %v879, %v880
        %v882 = vrot.slane %v881, 1
        %v883 = vadd.f32 %v881, %v882
        %v884 = vadd.f32 %v760, %v762
        %v885 = vrot.slane %v884, 4
        %v886 = vadd.f32 %v884, %v885
        %v887 = vrot.slane %v886, 2
        %v888 = vadd.f32 %v886, %v887
        %v889 = vrot.slane %v888, 1
        %v890 = vadd.f32 %v888, %v889
        %v891 = vrcp.pop %v841
        %v892 = vrcp.pop %v848
        %v893 = vrcp.pop %v855
        %v894 = vrcp.pop %v862
        %v895 = vrcp.pop %v869
        %v896 = vrcp.pop %v876
        %v897 = vrcp.pop %v883
        %v898 = vrcp.pop %v890
        %v899 = vmul.f32 %v785, %v891
        %v900 = vmul.f32 %v792, %v892
        %v901 = vmul.f32 %v799, %v893
        %v902 = vmul.f32 %v806, %v894
        %v903 = vmul.f32 %v813, %v895
        %v904 = vmul.f32 %v820, %v896
        %v905 = vmul.f32 %v827, %v897
        %v906 = vmul.f32 %v834, %v898
        %vm915 = vcmask 1041409
        %v916 = vsel %vm915, %v900, %v899
        %vm917 = vcmask 1042434
        %v918 = vsel %vm917, %v901, %v916
        %vm919 = vcmask 1043459
        %v920 = vsel %vm919, %v902, %v918
        %vm921 = vcmask 1044484
        %v922 = vsel %vm921, %v903, %v920
        %vm923 = vcmask 1045509
        %v924 = vsel %vm923, %v904, %v922
        %vm925 = vcmask 1046534
        %v926 = vsel %vm925, %v905, %v924
        %vm927 = vcmask 1047559
        %v928 = vsel %vm927, %v906, %v926
        %930 = vst [vmem:[%s272] sm:$0xff] %v928
        %s931 = sand.u32 %s141, 1
        %s932 = scalar_lea.sflag [#allocation4], %s931
        %s933 = sand.u32 %s141, 1
        %s934 = smul.addr %s933, 8
        %s935 = scalar_lea.vmem [#allocation8], %s934
        // Predicated region
        $region53: #{tpu_custom_call.1} parent=39 // pred_check
          %p936 = pneg %p151
        $region54: #{tpu_custom_call.1} parent=39 // pred_check_branch
          %938 = sbr.rel (%p936) target = $region56
        $region55: #{tpu_custom_call.1} parent=39 // pred_region
          %s940 = ssub.s32 128, 128
          %941 = vsyncadd %s932, %s940
          %s942 = smul.addr %s23, 128
          %s943 = scalar_lea.hbm %s5, %s942
          %s945 = sshll.u32 %s935, 4
          %s946 = int_to_ptr.vmem [resolvable:$true] %s945
          %948 = dma.vmem_to_hbm [thread:$0]  %s946, 128, %s943, %s932
        $region56: #{tpu_custom_call.1} parent=39 // pred_fallthru
          _
      $region40: #{tpu_custom_call.1} parent=5 // pred_fallthru
        _
      %p949 = scmp.le.s32.totalorder 2, %s18
      // Predicated region
      $region57: #{tpu_custom_call.1} parent=5 // pred_check
        %p950 = pneg %p949
      $region58: #{tpu_custom_call.1} parent=5 // pred_check_branch
        %952 = sbr.rel (%p950) target = $region60
      $region59: #{tpu_custom_call.1} parent=5 // pred_region
        %s953 = ssub.s32 %s18, 2
        // Predicated region
        $region61: #{tpu_custom_call.1} parent=59 // pred_check
          %p954 = pneg %p157
        $region62: #{tpu_custom_call.1} parent=59 // pred_check_branch
          %956 = sbr.rel (%p954) target = $region64
        $region63: #{tpu_custom_call.1} parent=59 // pred_region
          %s957 = sand.u32 %s142, 1
          %s958 = scalar_lea.sflag [#allocation4], %s957
          %s959 = sand.u32 %s142, 1
          %s960 = smul.addr %s959, 8
          %s961 = scalar_lea.vmem [#allocation8], %s960
          %962 = dma.done %s958, 128
        $region64: #{tpu_custom_call.1} parent=59 // pred_fallthru
          _
      $region60: #{tpu_custom_call.1} parent=5 // pred_fallthru
        _
    $region6: #{tpu_custom_call.1} parent=1 // loop_footer
      %s22 = sadd.s32 1, %s18
    $region7: #{tpu_custom_call.1} parent=1 // loop_footer_branch
      %17 = sbr.rel target = $region3
    $region8: #{tpu_custom_call.1} parent=1 // loop_exit
      _
    %963 = vsyncpa [#allocation3], 1
    %s964 = scalar_lea.sflag [#allocation3], 1
    %965 = vsyncpa %s964, 1
    %966 = vsyncpa [#allocation6], 1
    %967 = vsyncpa [#allocation4], 1
    %s968 = scalar_lea.sflag [#allocation4], 1
    %969 = vsyncpa %s968, 1

</llo_original>
